<compile_context>
chip_gen: v5e
topology: v5e:2x2
jax: 0.10.0
libtpu: 0.0.40
codegen_flags: <defaults>
</compile_context>

<pallas_src>
import functools

import jax
import jax.numpy as jnp
from jax.experimental import pallas as pl
from jax.experimental.pallas import tpu as pltpu

INPUT_DIM = 512
HIDDEN_DIM = 256


def _round_up(n, m):
    return ((n + m - 1) // m) * m


def mlp_kernel(x_ref, w1_ref, b1_ref, w2_ref, b2_ref, o_ref, *, mxu_dtype):
    """One batch tile: (TB, 512) -> (1, TB)."""
    x = x_ref[...]
    if x.dtype != mxu_dtype:
        # In-kernel cast: x is read from HBM exactly once (no wrapper-side copy).
        x = x.astype(mxu_dtype)
    # Layer 1 on the MXU: (TB, 512) @ (512, 256), f32 accumulation.
    h = jnp.dot(x, w1_ref[...], preferred_element_type=jnp.float32)
    h = jnp.maximum(h + b1_ref[...], 0.0)                        # bias + ReLU (VPU)
    # Layer 2 (256 -> 1) as VPU multiply + lane reduction (XLU) so the output stays
    # lane-dense; b2 is a scalar from SMEM. (Sublane->lane relayout of out_row is
    # a verify-in-bundle item; expected hidden under the HBM-bound x stream.)
    out_row = jnp.sum(h * w2_ref[...], axis=-1) + b2_ref[0, 0]   # (TB,)
    o_ref[...] = out_row[None, :].astype(o_ref.dtype)            # (1, TB)


def prepare_params(w1, b1, w2, b2, *, use_bf16=True):
    """One-time parameter prep (per model / per weight update), hoisted out of the
    per-call hot path. use_bf16=True is an explicit opt-in to bf16 MXU feed."""
    mxu_dtype = jnp.bfloat16 if use_bf16 else jnp.float32
    w1_p = jnp.asarray(w1, dtype=mxu_dtype).reshape(INPUT_DIM, HIDDEN_DIM)
    b1_p = jnp.asarray(b1, dtype=jnp.float32).reshape(1, HIDDEN_DIM)
    w2_p = jnp.asarray(w2, dtype=jnp.float32).reshape(1, HIDDEN_DIM)  # (256,1)->(1,256)
    b2_p = jnp.asarray(b2, dtype=jnp.float32).reshape(1, 1)
    return w1_p, b1_p, w2_p, b2_p


def _choose_batch_tile(b_pad, block_b):
    block_b = max(256, _round_up(block_b, 256))   # 256-aligned (MXU width v6e/v7x)
    if b_pad <= 256:
        return b_pad                              # one small full-array tile
    if b_pad <= block_b:
        # Split into >=2 tiles so the "parallel" grid axis can shard across the
        # two TensorCores on v7x (harmless no-op on single-TC v5e/v6e).
        return min(block_b, _round_up(-(-b_pad // 2), 256))
    return block_b


def simple_model_forward(x, params, *, block_b=2048):
    """x: (B, 512) -> (B, 1), matching SimpleModel.forward.

    params = prepare_params(w1, b1, w2, b2, use_bf16=...)."""
    w1_p, b1_p, w2_p, b2_p = params
    B = x.shape[0]

    # Pad only to the sublane multiple (8); skip the copy entirely when aligned.
    b_pad = _round_up(B, 8)
    if b_pad != B:
        x = jnp.pad(x, ((0, b_pad - B), (0, 0)))

    tb = _choose_batch_tile(b_pad, block_b)
    num_tiles = pl.cdiv(b_pad, tb)       # last tile may be ragged (OOB masked)

    cost = pl.CostEstimate(
        flops=2 * b_pad * INPUT_DIM * HIDDEN_DIM + 4 * b_pad * HIDDEN_DIM,
        transcendentals=0,
        bytes_accessed=(x.size * x.dtype.itemsize
                        + w1_p.size * w1_p.dtype.itemsize
                        + 4 * (2 * HIDDEN_DIM + 1 + b_pad)),
    )

    out_flat = pl.pallas_call(
        functools.partial(mlp_kernel, mxu_dtype=w1_p.dtype),
        out_shape=jax.ShapeDtypeStruct((1, b_pad), jnp.float32),
        grid_spec=pl.GridSpec(
            grid=(num_tiles,),
            in_specs=[
                pl.BlockSpec((tb, INPUT_DIM), lambda i: (i, 0)),          # x tile
                pl.BlockSpec((INPUT_DIM, HIDDEN_DIM), lambda i: (0, 0)),  # w1 resident
                pl.BlockSpec((1, HIDDEN_DIM), lambda i: (0, 0)),          # b1 resident
                pl.BlockSpec((1, HIDDEN_DIM), lambda i: (0, 0)),          # w2 row resident
                pl.BlockSpec(memory_space=pltpu.MemorySpace.SMEM),        # b2 scalar
            ],
            out_specs=pl.BlockSpec((1, tb), lambda i: (0, i)),            # lane-dense
        ),
        compiler_params=pltpu.CompilerParams(
            # Megacore sharding on v7x; no-op on single-TC v5e/v6e.
            dimension_semantics=("parallel",),
            # block_b=2048 keeps double-buffered x tiles + h well under the 32 MiB
            # default scoped-VMEM limit (and v7x's 64 MiB physical). Set
            # vmem_limit_bytes explicitly before pushing block_b past ~4096.
        ),
        cost_estimate=cost,
    )(x, w1_p, b1_p, w2_p, b2_p)

    # Free layout plumbing: (1, b_pad) -> (B, 1).
    return out_flat.reshape(b_pad, 1)[:B]


def init_params(key):
    """Deterministic param init matching nn.Linear shapes (stored as (in, out))."""
    k1, k2, k3, k4 = jax.random.split(key, 4)
    lim1 = 1.0 / (INPUT_DIM ** 0.5)
    lim2 = 1.0 / (HIDDEN_DIM ** 0.5)
    w1 = jax.random.uniform(k1, (INPUT_DIM, HIDDEN_DIM), jnp.float32, -lim1, lim1)
    b1 = jax.random.uniform(k2, (1, HIDDEN_DIM), jnp.float32, -lim1, lim1)
    w2 = jax.random.uniform(k3, (HIDDEN_DIM, 1), jnp.float32, -lim2, lim2)
    b2 = jax.random.uniform(k4, (1, 1), jnp.float32, -lim2, lim2)
    return w1, b1, w2, b2


def _ref_forward(x, w1, b1, w2, b2):
    h = jnp.maximum(jnp.dot(x, w1, precision=jax.lax.Precision.HIGHEST) + b1, 0.0)
    return jnp.dot(h, w2, precision=jax.lax.Precision.HIGHEST) + b2


if __name__ == "__main__":
    key = jax.random.PRNGKey(0)
    kx, kp = jax.random.split(key)
    w1, b1, w2, b2 = init_params(kp)

    # Small demo batch (single full-array tile, no padding copy needed).
    batch = 32
    x = jax.random.normal(kx, (batch, INPUT_DIM), dtype=jnp.float32)

    # Default bf16 MXU path: params prepared once, outside the hot path.
    params_bf16 = prepare_params(w1, b1, w2, b2, use_bf16=True)
    out = jax.block_until_ready(simple_model_forward(x, params_bf16))
    assert out.shape == (batch, 1)
    xb = x.astype(jnp.bfloat16).astype(jnp.float32)
    w1b = w1.astype(jnp.bfloat16).astype(jnp.float32)
    ref_bf16 = _ref_forward(xb, w1b, b1, w2, b2)
    assert jnp.allclose(out, ref_bf16, atol=1e-2, rtol=1e-2)

    # Pure-f32 path against the full-precision reference.
    params_f32 = prepare_params(w1, b1, w2, b2, use_bf16=False)
    out_f32 = jax.block_until_ready(simple_model_forward(x, params_f32))
    ref_f32 = _ref_forward(x, w1, b1, w2, b2)
    assert jnp.allclose(out_f32, ref_f32, atol=2e-3, rtol=2e-3)

    # Multi-tile path with a ragged last tile (600 rows -> two 512-row tiles),
    # exercising the v7x two-TensorCore split and OOB masking.
    batch2 = 600
    x2 = jax.random.normal(jax.random.PRNGKey(1), (batch2, INPUT_DIM), jnp.float32)
    out2 = jax.block_until_ready(simple_model_forward(x2, params_f32))
    ref2 = _ref_forward(x2, w1, b1, w2, b2)
    assert out2.shape == (batch2, 1)
    assert jnp.allclose(out2, ref2, atol=2e-3, rtol=2e-3)

    print("KERNEL_OK")
</pallas_src>

<mosaic_0001>
module attributes {stable_mosaic.version = 11 : i64} {
  func.func @mlp_kernel(%arg0: i32, %arg1: memref<32x512xf32, #tpu.memory_space<vmem>>, %arg2: memref<512x256xbf16, #tpu.memory_space<vmem>>, %arg3: memref<1x256xf32, #tpu.memory_space<vmem>>, %arg4: memref<1x256xf32, #tpu.memory_space<vmem>>, %arg5: memref<1x1xf32, #tpu.memory_space<smem>>, %arg6: memref<1x32xf32, #tpu.memory_space<vmem>>) attributes {dimension_semantics = [#tpu.dimension_semantics<parallel>], iteration_bounds = array<i64: 1>, scalar_prefetch = 0 : i64, scratch_operands = 0 : i64, tpu.core_type = #tpu.core_type<tc>, window_params = [{transform_indices = @transform_0, window_bounds = array<i64: 32, 512>}, {pipeline_mode = #tpu.pipeline_mode<synchronous>, transform_indices = @transform_1, window_bounds = array<i64: 512, 256>}, {pipeline_mode = #tpu.pipeline_mode<synchronous>, transform_indices = @transform_2, window_bounds = array<i64: 1, 256>}, {pipeline_mode = #tpu.pipeline_mode<synchronous>, transform_indices = @transform_3, window_bounds = array<i64: 1, 256>}, {transform_indices = @transform_4, window_bounds = array<i64: 1, 1>}, {transform_indices = @transform_5, window_bounds = array<i64: 1, 32>}]} {
    %c0 = arith.constant 0 : index
    %c0_0 = arith.constant 0 : index
    %0 = vector.load %arg1[%c0, %c0_0] : memref<32x512xf32, #tpu.memory_space<vmem>>, vector<32x512xf32>
    %1 = arith.truncf %0 : vector<32x512xf32> to vector<32x512xbf16>
    %c0_1 = arith.constant 0 : index
    %c0_2 = arith.constant 0 : index
    %2 = vector.load %arg2[%c0_1, %c0_2] : memref<512x256xbf16, #tpu.memory_space<vmem>>, vector<512x256xbf16>
    %cst = arith.constant dense<0.000000e+00> : vector<32x256xf32>
    %3 = tpu.matmul %1, %2, %cst {dimension_numbers = #tpu.dot_dimension_numbers<[1], [0], [0], [1], [0, 0, 1, 1], [], []>} : vector<32x512xbf16>, vector<512x256xbf16>, vector<32x256xf32> -> vector<32x256xf32>
    %c0_3 = arith.constant 0 : index
    %c0_4 = arith.constant 0 : index
    %4 = vector.load %arg3[%c0_3, %c0_4] : memref<1x256xf32, #tpu.memory_space<vmem>>, vector<1x256xf32>
    %5 = vector.broadcast %4 : vector<1x256xf32> to vector<32x256xf32>
    %6 = arith.addf %3, %5 : vector<32x256xf32>
    %cst_5 = arith.constant 0.000000e+00 : f32
    %7 = vector.broadcast %cst_5 : f32 to vector<32x256xf32>
    %8 = arith.maximumf %6, %7 : vector<32x256xf32>
    %c0_6 = arith.constant 0 : index
    %c0_7 = arith.constant 0 : index
    %9 = vector.load %arg4[%c0_6, %c0_7] : memref<1x256xf32, #tpu.memory_space<vmem>>, vector<1x256xf32>
    %10 = vector.broadcast %9 : vector<1x256xf32> to vector<32x256xf32>
    %11 = arith.mulf %8, %10 : vector<32x256xf32>
    %cst_8 = arith.constant dense<0.000000e+00> : vector<32xf32>
    %12 = vector.multi_reduction <add>, %11, %cst_8 [1] : vector<32x256xf32> to vector<32xf32>
    %c0_9 = arith.constant 0 : index
    %c0_10 = arith.constant 0 : index
    %13 = memref.load %arg5[%c0_9, %c0_10] : memref<1x1xf32, #tpu.memory_space<smem>>
    %14 = vector.broadcast %13 : f32 to vector<32xf32>
    %15 = arith.addf %12, %14 : vector<32xf32>
    %16 = vector.shape_cast %15 : vector<32xf32> to vector<1x32xf32>
    %c0_11 = arith.constant 0 : index
    %c0_12 = arith.constant 0 : index
    %17 = vector.load %arg6[%c0_11, %c0_12] : memref<1x32xf32, #tpu.memory_space<vmem>>, vector<1x32xf32>
    tpu.vector_store %arg6[%c0_11, %c0_12], %16 {strides = array<i32>} : memref<1x32xf32, #tpu.memory_space<vmem>>, vector<1x32xf32>,
    return
  }
  func.func @transform_0(%arg0: i32) -> (i32, i32) {
    %c0_i32 = arith.constant 0 : i32
    %c0_i32_0 = arith.constant 0 : i32
    return %arg0, %c0_i32 : i32, i32
  }
  func.func @transform_1(%arg0: i32) -> (i32, i32) {
    %c0_i32 = arith.constant 0 : i32
    %c0_i32_0 = arith.constant 0 : i32
    %c0_i32_1 = arith.constant 0 : i32
    return %c0_i32, %c0_i32_0 : i32, i32
  }
  func.func @transform_2(%arg0: i32) -> (i32, i32) {
    %c0_i32 = arith.constant 0 : i32
    %c0_i32_0 = arith.constant 0 : i32
    %c0_i32_1 = arith.constant 0 : i32
    return %c0_i32, %c0_i32_0 : i32, i32
  }
  func.func @transform_3(%arg0: i32) -> (i32, i32) {
    %c0_i32 = arith.constant 0 : i32
    %c0_i32_0 = arith.constant 0 : i32
    %c0_i32_1 = arith.constant 0 : i32
    return %c0_i32, %c0_i32_0 : i32, i32
  }
  func.func @transform_4(%arg0: i32) -> (i32, i32) {
    %c0_i32 = arith.constant 0 : i32
    %c0_i32_0 = arith.constant 0 : i32
    %c0_i32_1 = arith.constant 0 : i32
    return %c0_i32, %c0_i32_0 : i32, i32
  }
  func.func @transform_5(%arg0: i32) -> (i32, i32) {
    %c0_i32 = arith.constant 0 : i32
    %c0_i32_0 = arith.constant 0 : i32
    return %c0_i32, %arg0 : i32, i32
  }
}

</mosaic_0001>

<llo_original>
// kernel: tpu_custom_call.1
$region0: #{tpu_custom_call.1}
  #allocation0 [shape = 'u32[]', space=smem, size = 0x4, offset = 0x4, fixed_abs, tag = 'smem constant byte address 0x4 - core index']
  #allocation1 [shape = 'u32[72,128]{1,0:T(1,128)}', space=vmem, size = 0x9000, scoped, tag = 'internal scratch']
  #allocation2 [shape = 'f32[1,1]{1,0:T(1,128)S(6)}', space=smem, size = 0x200, scoped, tag = 'scoped memory for tpu_custom_call.1']
  %s0 = inlined_call_operand.hbm [shape: f32[32,512], index: 0, kind: input, shape index: {}]
  %s1 = inlined_call_operand.hbm [shape: bf16[512,256], index: 1, kind: input, shape index: {}]
  %s2 = inlined_call_operand.vmem [shape: f32[1,256], index: 2, kind: input, shape index: {}]
  %s3 = inlined_call_operand.vmem [shape: f32[1,256], index: 3, kind: input, shape index: {}]
  %s4 = inlined_call_operand.<no memory space> [shape: f32[1,1], index: 4, kind: input, shape index: {}]
  %s5 = inlined_call_operand.hbm [shape: f32[1,32], index: 5, kind: output, shape index: {}]
  %s6 = sld [smem:[#allocation0]]
  $region38: #{tpu_custom_call.1} parent=0
    _
  %s8 = ssub.s32 1, %s6
  %s9 = scalar_select 0, %s8, %s6
  %10 = sst [smem:[#allocation2]] %s4
  $region1: #{tpu_custom_call.1} parent=0
    #allocation3 [shape = 'u8[65536]{0}', space=vmem, size = 0x10000, scoped, tag = 'input window, operand 0, single buffered']
    #allocation4 [shape = 's32[1]{0}', space=sflag, size = 0x4, scoped, tag = 'scoped memory for tpu_custom_call.1']
    #allocation5 [shape = 's32[1]{0}', space=sflag, size = 0x4, scoped, tag = 'scoped memory for tpu_custom_call.1']
    #allocation6 [shape = 'u8[262144]{0}', space=vmem, size = 0x40000, scoped, tag = 'input window, operand 1, single buffered']
    #allocation7 [shape = 's32[1]{0}', space=sflag, size = 0x4, scoped, tag = 'scoped memory for tpu_custom_call.1']
    #allocation8 [shape = 'u8[512]{0}', space=vmem, size = 0x400, scoped, tag = 'output window, operand 0, single buffered']
    %11 = vsyncpa [#allocation4], 0
    %12 = vsyncpa [#allocation7], 0
    %13 = vsyncpa [#allocation5], 0
    // Predicated region
    $region2: #{tpu_custom_call.1} parent=1 // pred_check
      _
    $region3: #{tpu_custom_call.1} parent=1 // pred_check_branch
      %15 = sbr.rel (0) target = $region5
    $region4: #{tpu_custom_call.1} parent=1 // pred_region
      %17 = vsyncadd [#allocation4], 0
      %s18 = sshll.u32 %s0, 4
      %s19 = int_to_ptr.hbm [resolvable:$true] %s18
      %s20 = sshll.u32 [#allocation3], 4
      %s21 = int_to_ptr.vmem [resolvable:$true] %s20
      %26 = dma.hbm_to_vmem [thread:$0]  %s19, 2048, %s21, [#allocation4], 512, 512, 32
    $region5: #{tpu_custom_call.1} parent=1 // pred_fallthru
      _
    // Predicated region
    $region6: #{tpu_custom_call.1} parent=1 // pred_check
      _
    $region7: #{tpu_custom_call.1} parent=1 // pred_check_branch
      %28 = sbr.rel (0) target = $region9
    $region8: #{tpu_custom_call.1} parent=1 // pred_region
      %30 = vsyncadd [#allocation7], 0
      %s31 = sshll.u32 %s1, 4
      %s32 = int_to_ptr.hbm [resolvable:$true] %s31
      %s33 = sshll.u32 [#allocation6], 4
      %s34 = int_to_ptr.vmem [resolvable:$true] %s33
      %39 = dma.hbm_to_vmem [thread:$0]  %s32, 8192, %s34, [#allocation7], 128, 128, 8
    $region9: #{tpu_custom_call.1} parent=1 // pred_fallthru
      _
    // Predicated region
    $region10: #{tpu_custom_call.1} parent=1 // pred_check
      _
    $region11: #{tpu_custom_call.1} parent=1 // pred_check_branch
      %41 = sbr.rel (0) target = $region13
    $region12: #{tpu_custom_call.1} parent=1 // pred_region
      _
    $region13: #{tpu_custom_call.1} parent=1 // pred_fallthru
      _
    // Predicated region
    $region14: #{tpu_custom_call.1} parent=1 // pred_check
      _
    $region15: #{tpu_custom_call.1} parent=1 // pred_check_branch
      %43 = sbr.rel (0) target = $region17
    $region16: #{tpu_custom_call.1} parent=1 // pred_region
      _
    $region17: #{tpu_custom_call.1} parent=1 // pred_fallthru
      _
    // Predicated region
    $region18: #{tpu_custom_call.1} parent=1 // pred_check
      _
    $region19: #{tpu_custom_call.1} parent=1 // pred_check_branch
      %45 = sbr.rel (0) target = $region21
    $region20: #{tpu_custom_call.1} parent=1 // pred_region
      _
    $region21: #{tpu_custom_call.1} parent=1 // pred_fallthru
      _
    // Predicated region
    $region22: #{tpu_custom_call.1} parent=1 // pred_check
      _
    $region23: #{tpu_custom_call.1} parent=1 // pred_check_branch
      %47 = sbr.rel (0) target = $region25
    $region24: #{tpu_custom_call.1} parent=1 // pred_region
      %49 = dma.done [#allocation4], 2048
    $region25: #{tpu_custom_call.1} parent=1 // pred_fallthru
      _
    // Predicated region
    $region26: #{tpu_custom_call.1} parent=1 // pred_check
      _
    $region27: #{tpu_custom_call.1} parent=1 // pred_check_branch
      %51 = sbr.rel (0) target = $region29
    $region28: #{tpu_custom_call.1} parent=1 // pred_region
      %53 = dma.done [#allocation7], 8192
    $region29: #{tpu_custom_call.1} parent=1 // pred_fallthru
      _
    %v54 = vld [vmem:[#allocation3] sm:$0xff]
    %v55 = vld [vmem:[#allocation3 + $0x8] sm:$0xff]
    %v56 = vld [vmem:[#allocation3 + $0x10] sm:$0xff]
    %v57 = vld [vmem:[#allocation3 + $0x18] sm:$0xff]
    %v58 = vld [vmem:[#allocation3 + $0x20] sm:$0xff]
    %v59 = vld [vmem:[#allocation3 + $0x28] sm:$0xff]
    %v60 = vld [vmem:[#allocation3 + $0x30] sm:$0xff]
    %v61 = vld [vmem:[#allocation3 + $0x38] sm:$0xff]
    %v62 = vld [vmem:[#allocation3 + $0x40] sm:$0xff]
    %v63 = vld [vmem:[#allocation3 + $0x48] sm:$0xff]
    %v64 = vld [vmem:[#allocation3 + $0x50] sm:$0xff]
    %v65 = vld [vmem:[#allocation3 + $0x58] sm:$0xff]
    %v66 = vld [vmem:[#allocation3 + $0x60] sm:$0xff]
    %v67 = vld [vmem:[#allocation3 + $0x68] sm:$0xff]
    %v68 = vld [vmem:[#allocation3 + $0x70] sm:$0xff]
    %v69 = vld [vmem:[#allocation3 + $0x78] sm:$0xff]
    %v70 = vpack.c.bf16 %v58, %v54
    %v71 = vpack.c.bf16 %v59, %v55
    %v72 = vpack.c.bf16 %v60, %v56
    %v73 = vpack.c.bf16 %v61, %v57
    %v74 = vpack.c.bf16 %v66, %v62
    %v75 = vpack.c.bf16 %v67, %v63
    %v76 = vpack.c.bf16 %v68, %v64
    %v77 = vpack.c.bf16 %v69, %v65
    %v78 = vld [vmem:[#allocation6] sm:$0xff]
    %v79 = vld [vmem:[#allocation6 + $0x8] sm:$0xff]
    %v80 = vld [vmem:[#allocation6 + $0x10] sm:$0xff]
    %v81 = vld [vmem:[#allocation6 + $0x18] sm:$0xff]
    %v82 = vld [vmem:[#allocation6 + $0x20] sm:$0xff]
    %v83 = vld [vmem:[#allocation6 + $0x28] sm:$0xff]
    %v84 = vld [vmem:[#allocation6 + $0x30] sm:$0xff]
    %v85 = vld [vmem:[#allocation6 + $0x38] sm:$0xff]
    %v86 = vld [vmem:[#allocation6 + $0x40] sm:$0xff]
    %v87 = vld [vmem:[#allocation6 + $0x48] sm:$0xff]
    %v88 = vld [vmem:[#allocation6 + $0x50] sm:$0xff]
    %v89 = vld [vmem:[#allocation6 + $0x58] sm:$0xff]
    %v90 = vld [vmem:[#allocation6 + $0x60] sm:$0xff]
    %v91 = vld [vmem:[#allocation6 + $0x68] sm:$0xff]
    %v92 = vld [vmem:[#allocation6 + $0x70] sm:$0xff]
    %v93 = vld [vmem:[#allocation6 + $0x78] sm:$0xff]
    %v94 = vld [vmem:[#allocation6 + $0x80] sm:$0xff]
    %v95 = vld [vmem:[#allocation6 + $0x88] sm:$0xff]
    %v96 = vld [vmem:[#allocation6 + $0x90] sm:$0xff]
    %v97 = vld [vmem:[#allocation6 + $0x98] sm:$0xff]
    %v98 = vld [vmem:[#allocation6 + $0xa0] sm:$0xff]
    %v99 = vld [vmem:[#allocation6 + $0xa8] sm:$0xff]
    %v100 = vld [vmem:[#allocation6 + $0xb0] sm:$0xff]
    %v101 = vld [vmem:[#allocation6 + $0xb8] sm:$0xff]
    %v102 = vld [vmem:[#allocation6 + $0xc0] sm:$0xff]
    %v103 = vld [vmem:[#allocation6 + $0xc8] sm:$0xff]
    %v104 = vld [vmem:[#allocation6 + $0xd0] sm:$0xff]
    %v105 = vld [vmem:[#allocation6 + $0xd8] sm:$0xff]
    %v106 = vld [vmem:[#allocation6 + $0xe0] sm:$0xff]
    %v107 = vld [vmem:[#allocation6 + $0xe8] sm:$0xff]
    %v108 = vld [vmem:[#allocation6 + $0xf0] sm:$0xff]
    %v109 = vld [vmem:[#allocation6 + $0xf8] sm:$0xff]
    %v110 = vld [vmem:[#allocation6 + $0x100] sm:$0xff]
    %v111 = vld [vmem:[#allocation6 + $0x108] sm:$0xff]
    %v112 = vld [vmem:[#allocation6 + $0x110] sm:$0xff]
    %v113 = vld [vmem:[#allocation6 + $0x118] sm:$0xff]
    %v114 = vld [vmem:[#allocation6 + $0x120] sm:$0xff]
    %v115 = vld [vmem:[#allocation6 + $0x128] sm:$0xff]
    %v116 = vld [vmem:[#allocation6 + $0x130] sm:$0xff]
    %v117 = vld [vmem:[#allocation6 + $0x138] sm:$0xff]
    %v118 = vld [vmem:[#allocation6 + $0x140] sm:$0xff]
    %v119 = vld [vmem:[#allocation6 + $0x148] sm:$0xff]
    %v120 = vld [vmem:[#allocation6 + $0x150] sm:$0xff]
    %v121 = vld [vmem:[#allocation6 + $0x158] sm:$0xff]
    %v122 = vld [vmem:[#allocation6 + $0x160] sm:$0xff]
    %v123 = vld [vmem:[#allocation6 + $0x168] sm:$0xff]
    %v124 = vld [vmem:[#allocation6 + $0x170] sm:$0xff]
    %v125 = vld [vmem:[#allocation6 + $0x178] sm:$0xff]
    %v126 = vld [vmem:[#allocation6 + $0x180] sm:$0xff]
    %v127 = vld [vmem:[#allocation6 + $0x188] sm:$0xff]
    %v128 = vld [vmem:[#allocation6 + $0x190] sm:$0xff]
    %v129 = vld [vmem:[#allocation6 + $0x198] sm:$0xff]
    %v130 = vld [vmem:[#allocation6 + $0x1a0] sm:$0xff]
    %v131 = vld [vmem:[#allocation6 + $0x1a8] sm:$0xff]
    %v132 = vld [vmem:[#allocation6 + $0x1b0] sm:$0xff]
    %v133 = vld [vmem:[#allocation6 + $0x1b8] sm:$0xff]
    %v134 = vld [vmem:[#allocation6 + $0x1c0] sm:$0xff]
    %v135 = vld [vmem:[#allocation6 + $0x1c8] sm:$0xff]
    %v136 = vld [vmem:[#allocation6 + $0x1d0] sm:$0xff]
    %v137 = vld [vmem:[#allocation6 + $0x1d8] sm:$0xff]
    %v138 = vld [vmem:[#allocation6 + $0x1e0] sm:$0xff]
    %v139 = vld [vmem:[#allocation6 + $0x1e8] sm:$0xff]
    %v140 = vld [vmem:[#allocation6 + $0x1f0] sm:$0xff]
    %v141 = vld [vmem:[#allocation6 + $0x1f8] sm:$0xff]
    %v142 = vld [vmem:[%s2] sm:$0x3]
    %v144 = vperm.slane %v142, 0
    %v145 = vperm.slane %v142, 1
    %v212 = vunpack.c.l.b16 %v78
    %v213 = vunpack.c.h.b16 %v78
    %v214 = vunpack.c.l.b16 %v79
    %v215 = vunpack.c.h.b16 %v79
    %v216 = vunpack.c.l.b16 %v80
    %v217 = vunpack.c.h.b16 %v80
    %v218 = vunpack.c.l.b16 %v81
    %v219 = vunpack.c.h.b16 %v81
    %v220 = vunpack.c.l.b16 %v82
    %v221 = vunpack.c.h.b16 %v82
    %v222 = vunpack.c.l.b16 %v83
    %v223 = vunpack.c.h.b16 %v83
    %v224 = vunpack.c.l.b16 %v84
    %v225 = vunpack.c.h.b16 %v84
    %v226 = vunpack.c.l.b16 %v85
    %v227 = vunpack.c.h.b16 %v85
    %v228 = vunpack.c.l.b16 %v86
    %v229 = vunpack.c.h.b16 %v86
    %v230 = vunpack.c.l.b16 %v87
    %v231 = vunpack.c.h.b16 %v87
    %v232 = vunpack.c.l.b16 %v88
    %v233 = vunpack.c.h.b16 %v88
    %v234 = vunpack.c.l.b16 %v89
    %v235 = vunpack.c.h.b16 %v89
    %v236 = vunpack.c.l.b16 %v90
    %v237 = vunpack.c.h.b16 %v90
    %v238 = vunpack.c.l.b16 %v91
    %v239 = vunpack.c.h.b16 %v91
    %v240 = vunpack.c.l.b16 %v92
    %v241 = vunpack.c.h.b16 %v92
    %v242 = vunpack.c.l.b16 %v93
    %v243 = vunpack.c.h.b16 %v93
    %v244 = vunpack.c.l.b16 %v94
    %v245 = vunpack.c.h.b16 %v94
    %v246 = vunpack.c.l.b16 %v95
    %v247 = vunpack.c.h.b16 %v95
    %v248 = vunpack.c.l.b16 %v96
    %v249 = vunpack.c.h.b16 %v96
    %v250 = vunpack.c.l.b16 %v97
    %v251 = vunpack.c.h.b16 %v97
    %v252 = vunpack.c.l.b16 %v98
    %v253 = vunpack.c.h.b16 %v98
    %v254 = vunpack.c.l.b16 %v99
    %v255 = vunpack.c.h.b16 %v99
    %v256 = vunpack.c.l.b16 %v100
    %v257 = vunpack.c.h.b16 %v100
    %v258 = vunpack.c.l.b16 %v101
    %v259 = vunpack.c.h.b16 %v101
    %v260 = vunpack.c.l.b16 %v102
    %v261 = vunpack.c.h.b16 %v102
    %v262 = vunpack.c.l.b16 %v103
    %v263 = vunpack.c.h.b16 %v103
    %v264 = vunpack.c.l.b16 %v104
    %v265 = vunpack.c.h.b16 %v104
    %v266 = vunpack.c.l.b16 %v105
    %v267 = vunpack.c.h.b16 %v105
    %v268 = vunpack.c.l.b16 %v106
    %v269 = vunpack.c.h.b16 %v106
    %v270 = vunpack.c.l.b16 %v107
    %v271 = vunpack.c.h.b16 %v107
    %v272 = vunpack.c.l.b16 %v108
    %v273 = vunpack.c.h.b16 %v108
    %v274 = vunpack.c.l.b16 %v109
    %v275 = vunpack.c.h.b16 %v109
    %v276 = vunpack.c.l.b16 %v110
    %v277 = vunpack.c.h.b16 %v110
    %v278 = vunpack.c.l.b16 %v111
    %v279 = vunpack.c.h.b16 %v111
    %v280 = vunpack.c.l.b16 %v112
    %v281 = vunpack.c.h.b16 %v112
    %v282 = vunpack.c.l.b16 %v113
    %v283 = vunpack.c.h.b16 %v113
    %v284 = vunpack.c.l.b16 %v114
    %v285 = vunpack.c.h.b16 %v114
    %v286 = vunpack.c.l.b16 %v115
    %v287 = vunpack.c.h.b16 %v115
    %v288 = vunpack.c.l.b16 %v116
    %v289 = vunpack.c.h.b16 %v116
    %v290 = vunpack.c.l.b16 %v117
    %v291 = vunpack.c.h.b16 %v117
    %v292 = vunpack.c.l.b16 %v118
    %v293 = vunpack.c.h.b16 %v118
    %v294 = vunpack.c.l.b16 %v119
    %v295 = vunpack.c.h.b16 %v119
    %v296 = vunpack.c.l.b16 %v120
    %v297 = vunpack.c.h.b16 %v120
    %v298 = vunpack.c.l.b16 %v121
    %v299 = vunpack.c.h.b16 %v121
    %v300 = vunpack.c.l.b16 %v122
    %v301 = vunpack.c.h.b16 %v122
    %v302 = vunpack.c.l.b16 %v123
    %v303 = vunpack.c.h.b16 %v123
    %v304 = vunpack.c.l.b16 %v124
    %v305 = vunpack.c.h.b16 %v124
    %v306 = vunpack.c.l.b16 %v125
    %v307 = vunpack.c.h.b16 %v125
    %v308 = vunpack.c.l.b16 %v126
    %v309 = vunpack.c.h.b16 %v126
    %v310 = vunpack.c.l.b16 %v127
    %v311 = vunpack.c.h.b16 %v127
    %v312 = vunpack.c.l.b16 %v128
    %v313 = vunpack.c.h.b16 %v128
    %v314 = vunpack.c.l.b16 %v129
    %v315 = vunpack.c.h.b16 %v129
    %v316 = vunpack.c.l.b16 %v130
    %v317 = vunpack.c.h.b16 %v130
    %v318 = vunpack.c.l.b16 %v131
    %v319 = vunpack.c.h.b16 %v131
    %v320 = vunpack.c.l.b16 %v132
    %v321 = vunpack.c.h.b16 %v132
    %v322 = vunpack.c.l.b16 %v133
    %v323 = vunpack.c.h.b16 %v133
    %v324 = vunpack.c.l.b16 %v134
    %v325 = vunpack.c.h.b16 %v134
    %v326 = vunpack.c.l.b16 %v135
    %v327 = vunpack.c.h.b16 %v135
    %v328 = vunpack.c.l.b16 %v136
    %v329 = vunpack.c.h.b16 %v136
    %v330 = vunpack.c.l.b16 %v137
    %v331 = vunpack.c.h.b16 %v137
    %v332 = vunpack.c.l.b16 %v138
    %v333 = vunpack.c.h.b16 %v138
    %v334 = vunpack.c.l.b16 %v139
    %v335 = vunpack.c.h.b16 %v139
    %v336 = vunpack.c.l.b16 %v140
    %v337 = vunpack.c.h.b16 %v140
    %v338 = vunpack.c.l.b16 %v141
    %v339 = vunpack.c.h.b16 %v141
    %v340 = vpack.c.b16 %v214, %v212
    %v341 = vpack.c.b16 %v215, %v213
    %v342 = vpack.c.b16 %v218, %v216
    %v343 = vpack.c.b16 %v219, %v217
    %v344 = vpack.c.b16 %v222, %v220
    %v345 = vpack.c.b16 %v223, %v221
    %v346 = vpack.c.b16 %v226, %v224
    %v347 = vpack.c.b16 %v227, %v225
    %v348 = vpack.c.b16 %v230, %v228
    %v349 = vpack.c.b16 %v231, %v229
    %v350 = vpack.c.b16 %v234, %v232
    %v351 = vpack.c.b16 %v235, %v233
    %v352 = vpack.c.b16 %v238, %v236
    %v353 = vpack.c.b16 %v239, %v237
    %v354 = vpack.c.b16 %v242, %v240
    %v355 = vpack.c.b16 %v243, %v241
    %v356 = vpack.c.b16 %v246, %v244
    %v357 = vpack.c.b16 %v247, %v245
    %v358 = vpack.c.b16 %v250, %v248
    %v359 = vpack.c.b16 %v251, %v249
    %v360 = vpack.c.b16 %v254, %v252
    %v361 = vpack.c.b16 %v255, %v253
    %v362 = vpack.c.b16 %v258, %v256
    %v363 = vpack.c.b16 %v259, %v257
    %v364 = vpack.c.b16 %v262, %v260
    %v365 = vpack.c.b16 %v263, %v261
    %v366 = vpack.c.b16 %v266, %v264
    %v367 = vpack.c.b16 %v267, %v265
    %v368 = vpack.c.b16 %v270, %v268
    %v369 = vpack.c.b16 %v271, %v269
    %v370 = vpack.c.b16 %v274, %v272
    %v371 = vpack.c.b16 %v275, %v273
    %v372 = vpack.c.b16 %v278, %v276
    %v373 = vpack.c.b16 %v279, %v277
    %v374 = vpack.c.b16 %v282, %v280
    %v375 = vpack.c.b16 %v283, %v281
    %v376 = vpack.c.b16 %v286, %v284
    %v377 = vpack.c.b16 %v287, %v285
    %v378 = vpack.c.b16 %v290, %v288
    %v379 = vpack.c.b16 %v291, %v289
    %v380 = vpack.c.b16 %v294, %v292
    %v381 = vpack.c.b16 %v295, %v293
    %v382 = vpack.c.b16 %v298, %v296
    %v383 = vpack.c.b16 %v299, %v297
    %v384 = vpack.c.b16 %v302, %v300
    %v385 = vpack.c.b16 %v303, %v301
    %v386 = vpack.c.b16 %v306, %v304
    %v387 = vpack.c.b16 %v307, %v305
    %v388 = vpack.c.b16 %v310, %v308
    %v389 = vpack.c.b16 %v311, %v309
    %v390 = vpack.c.b16 %v314, %v312
    %v391 = vpack.c.b16 %v315, %v313
    %v392 = vpack.c.b16 %v318, %v316
    %v393 = vpack.c.b16 %v319, %v317
    %v394 = vpack.c.b16 %v322, %v320
    %v395 = vpack.c.b16 %v323, %v321
    %v396 = vpack.c.b16 %v326, %v324
    %v397 = vpack.c.b16 %v327, %v325
    %v398 = vpack.c.b16 %v330, %v328
    %v399 = vpack.c.b16 %v331, %v329
    %v400 = vpack.c.b16 %v334, %v332
    %v401 = vpack.c.b16 %v335, %v333
    %v402 = vpack.c.b16 %v338, %v336
    %v403 = vpack.c.b16 %v339, %v337
    %468 = vmatpush.bf16.msra.mxu0 %v354
    %469 = vmatpush.bf16.msra.mxu0 %v352
    %470 = vmatpush.bf16.msra.mxu0 %v350
    %471 = vmatpush.bf16.msra.mxu0 %v348
    %472 = vmatpush.bf16.msra.mxu0 %v346
    %473 = vmatpush.bf16.msra.mxu0 %v344
    %474 = vmatpush.bf16.msra.mxu0 %v342
    %475 = vmatpush.bf16.msra.mxu0 %v340
    %476 = vmatmul.bf16.gmra.mxu0 %v70
    %v477 = vpop.f32.mrf.mxu0
    %v478 = vadd.f32 %v144, %v477
    %v479 = vpop.f32.mrf.mxu0
    %v480 = vadd.f32 %v144, %v479
    %481 = vmatmul.bf16.gmra.mxu0 %v74
    %v482 = vpop.f32.mrf.mxu0
    %v483 = vadd.f32 %v144, %v482
    %v484 = vpop.f32.mrf.mxu0
    %v485 = vadd.f32 %v144, %v484
    %486 = vdwg.mxu0
    %487 = vmatpush.bf16.msra.mxu0 %v370
    %488 = vmatpush.bf16.msra.mxu0 %v368
    %489 = vmatpush.bf16.msra.mxu0 %v366
    %490 = vmatpush.bf16.msra.mxu0 %v364
    %491 = vmatpush.bf16.msra.mxu0 %v362
    %492 = vmatpush.bf16.msra.mxu0 %v360
    %493 = vmatpush.bf16.msra.mxu0 %v358
    %494 = vmatpush.bf16.msra.mxu0 %v356
    %495 = vmatmul.bf16.gmra.mxu0 %v71
    %v496 = vpop.f32.mrf.mxu0
    %v497 = vadd.f32 %v478, %v496
    %v498 = vpop.f32.mrf.mxu0
    %v499 = vadd.f32 %v480, %v498
    %500 = vmatmul.bf16.gmra.mxu0 %v75
    %v501 = vpop.f32.mrf.mxu0
    %v502 = vadd.f32 %v483, %v501
    %v503 = vpop.f32.mrf.mxu0
    %v504 = vadd.f32 %v485, %v503
    %505 = vdwg.mxu0
    %506 = vmatpush.bf16.msra.mxu0 %v386
    %507 = vmatpush.bf16.msra.mxu0 %v384
    %508 = vmatpush.bf16.msra.mxu0 %v382
    %509 = vmatpush.bf16.msra.mxu0 %v380
    %510 = vmatpush.bf16.msra.mxu0 %v378
    %511 = vmatpush.bf16.msra.mxu0 %v376
    %512 = vmatpush.bf16.msra.mxu0 %v374
    %513 = vmatpush.bf16.msra.mxu0 %v372
    %514 = vmatmul.bf16.gmra.mxu0 %v72
    %v515 = vpop.f32.mrf.mxu0
    %v516 = vadd.f32 %v497, %v515
    %v517 = vpop.f32.mrf.mxu0
    %v518 = vadd.f32 %v499, %v517
    %519 = vmatmul.bf16.gmra.mxu0 %v76
    %v520 = vpop.f32.mrf.mxu0
    %v521 = vadd.f32 %v502, %v520
    %v522 = vpop.f32.mrf.mxu0
    %v523 = vadd.f32 %v504, %v522
    %524 = vdwg.mxu0
    %525 = vmatpush.bf16.msra.mxu0 %v402
    %526 = vmatpush.bf16.msra.mxu0 %v400
    %527 = vmatpush.bf16.msra.mxu0 %v398
    %528 = vmatpush.bf16.msra.mxu0 %v396
    %529 = vmatpush.bf16.msra.mxu0 %v394
    %530 = vmatpush.bf16.msra.mxu0 %v392
    %531 = vmatpush.bf16.msra.mxu0 %v390
    %532 = vmatpush.bf16.msra.mxu0 %v388
    %533 = vmatmul.bf16.gmra.mxu0 %v73
    %v534 = vpop.f32.mrf.mxu0
    %v535 = vadd.f32 %v516, %v534
    %v536 = vpop.f32.mrf.mxu0
    %v537 = vadd.f32 %v518, %v536
    %538 = vmatmul.bf16.gmra.mxu0 %v77
    %v539 = vpop.f32.mrf.mxu0
    %v540 = vadd.f32 %v521, %v539
    %v541 = vpop.f32.mrf.mxu0
    %v542 = vadd.f32 %v523, %v541
    %543 = vdwg.mxu0
    %544 = vmatpush.bf16.msra.mxu0 %v355
    %545 = vmatpush.bf16.msra.mxu0 %v353
    %546 = vmatpush.bf16.msra.mxu0 %v351
    %547 = vmatpush.bf16.msra.mxu0 %v349
    %548 = vmatpush.bf16.msra.mxu0 %v347
    %549 = vmatpush.bf16.msra.mxu0 %v345
    %550 = vmatpush.bf16.msra.mxu0 %v343
    %551 = vmatpush.bf16.msra.mxu0 %v341
    %552 = vmatmul.bf16.gmra.mxu0 %v70
    %v553 = vpop.f32.mrf.mxu0
    %v554 = vadd.f32 %v145, %v553
    %v555 = vpop.f32.mrf.mxu0
    %v556 = vadd.f32 %v145, %v555
    %557 = vmatmul.bf16.gmra.mxu0 %v74
    %v558 = vpop.f32.mrf.mxu0
    %v559 = vadd.f32 %v145, %v558
    %v560 = vpop.f32.mrf.mxu0
    %v561 = vadd.f32 %v145, %v560
    %562 = vdwg.mxu0
    %563 = vmatpush.bf16.msra.mxu0 %v371
    %564 = vmatpush.bf16.msra.mxu0 %v369
    %565 = vmatpush.bf16.msra.mxu0 %v367
    %566 = vmatpush.bf16.msra.mxu0 %v365
    %567 = vmatpush.bf16.msra.mxu0 %v363
    %568 = vmatpush.bf16.msra.mxu0 %v361
    %569 = vmatpush.bf16.msra.mxu0 %v359
    %570 = vmatpush.bf16.msra.mxu0 %v357
    %571 = vmatmul.bf16.gmra.mxu0 %v71
    %v572 = vpop.f32.mrf.mxu0
    %v573 = vadd.f32 %v554, %v572
    %v574 = vpop.f32.mrf.mxu0
    %v575 = vadd.f32 %v556, %v574
    %576 = vmatmul.bf16.gmra.mxu0 %v75
    %v577 = vpop.f32.mrf.mxu0
    %v578 = vadd.f32 %v559, %v577
    %v579 = vpop.f32.mrf.mxu0
    %v580 = vadd.f32 %v561, %v579
    %581 = vdwg.mxu0
    %582 = vmatpush.bf16.msra.mxu0 %v387
    %583 = vmatpush.bf16.msra.mxu0 %v385
    %584 = vmatpush.bf16.msra.mxu0 %v383
    %585 = vmatpush.bf16.msra.mxu0 %v381
    %586 = vmatpush.bf16.msra.mxu0 %v379
    %587 = vmatpush.bf16.msra.mxu0 %v377
    %588 = vmatpush.bf16.msra.mxu0 %v375
    %589 = vmatpush.bf16.msra.mxu0 %v373
    %590 = vmatmul.bf16.gmra.mxu0 %v72
    %v591 = vpop.f32.mrf.mxu0
    %v592 = vadd.f32 %v573, %v591
    %v593 = vpop.f32.mrf.mxu0
    %v594 = vadd.f32 %v575, %v593
    %595 = vmatmul.bf16.gmra.mxu0 %v76
    %v596 = vpop.f32.mrf.mxu0
    %v597 = vadd.f32 %v578, %v596
    %v598 = vpop.f32.mrf.mxu0
    %v599 = vadd.f32 %v580, %v598
    %600 = vdwg.mxu0
    %601 = vmatpush.bf16.msra.mxu0 %v403
    %602 = vmatpush.bf16.msra.mxu0 %v401
    %603 = vmatpush.bf16.msra.mxu0 %v399
    %604 = vmatpush.bf16.msra.mxu0 %v397
    %605 = vmatpush.bf16.msra.mxu0 %v395
    %606 = vmatpush.bf16.msra.mxu0 %v393
    %607 = vmatpush.bf16.msra.mxu0 %v391
    %608 = vmatpush.bf16.msra.mxu0 %v389
    %609 = vmatmul.bf16.gmra.mxu0 %v73
    %v610 = vpop.f32.mrf.mxu0
    %v611 = vadd.f32 %v592, %v610
    %v612 = vpop.f32.mrf.mxu0
    %v613 = vadd.f32 %v594, %v612
    %614 = vmatmul.bf16.gmra.mxu0 %v77
    %v615 = vpop.f32.mrf.mxu0
    %v616 = vadd.f32 %v597, %v615
    %v617 = vpop.f32.mrf.mxu0
    %v618 = vadd.f32 %v599, %v617
    %619 = vdwg.mxu0
    %v620 = vmax.f32 %v535, 0.0
    %v621 = vmax.f32 %v611, 0.0
    %v622 = vmax.f32 %v537, 0.0
    %v623 = vmax.f32 %v613, 0.0
    %v624 = vmax.f32 %v540, 0.0
    %v625 = vmax.f32 %v616, 0.0
    %v626 = vmax.f32 %v542, 0.0
    %v627 = vmax.f32 %v618, 0.0
    %v628 = vld [vmem:[%s3] sm:$0x3]
    %v630 = vperm.slane %v628, 0
    %v631 = vperm.slane %v628, 1
    %v634 = vmul.f32 %v620, %v630
    %v635 = vmul.f32 %v621, %v631
    %v636 = vmul.f32 %v622, %v630
    %v637 = vmul.f32 %v623, %v631
    %v638 = vmul.f32 %v624, %v630
    %v639 = vmul.f32 %v625, %v631
    %v640 = vmul.f32 %v626, %v630
    %v641 = vmul.f32 %v627, %v631
    %v642 = vadd.f32 %v634, %v635
    %643 = vadd.xlane.f32.xlu0 %v642
    %v644 = vpop.xlane.xlu0 %643
    %v645 = vadd.f32 %v636, %v637
    %646 = vadd.xlane.f32.xlu0 %v645
    %v647 = vpop.xlane.xlu0 %646
    %v648 = vadd.f32 %v638, %v639
    %649 = vadd.xlane.f32.xlu0 %v648
    %v650 = vpop.xlane.xlu0 %649
    %v651 = vadd.f32 %v640, %v641
    %652 = vadd.xlane.f32.xlu0 %v651
    %v653 = vpop.xlane.xlu0 %652
    %s654 = sld [smem:[#allocation2]]
    %v655 = vstv %s654
    %v656 = vadd.f32 %v644, %v655
    %v657 = vadd.f32 %v647, %v655
    %v658 = vadd.f32 %v650, %v655
    %v659 = vadd.f32 %v653, %v655
    %v664 = vlaneseq
    %v665 = vand.u32 %v664, 127
    %v666 = vperm.slane %v656, %v665
    %v667 = vadd.s32 %v665, 4294967288
    %v668 = vperm.slane %v657, %v667
    %vm669 = vcmask 130112
    %v670 = vsel %vm669, %v668, %v666
    %v671 = vadd.s32 %v665, 4294967280
    %v672 = vperm.slane %v658, %v671
    %vm673 = vcmask 195712
    %v674 = vsel %vm673, %v672, %v670
    %v675 = vadd.s32 %v665, 4294967272
    %v676 = vperm.slane %v659, %v675
    %vm677 = vcmask 261312
    %v678 = vsel %vm677, %v676, %v674
    %vm680 = vcmask 253952
    %681 = vst.msk [vmem:[#allocation8] sm:$0x1] %vm680, %v678
    // Predicated region
    $region30: #{tpu_custom_call.1} parent=1 // pred_check
      _
    $region31: #{tpu_custom_call.1} parent=1 // pred_check_branch
      %683 = sbr.rel (0) target = $region33
    $region32: #{tpu_custom_call.1} parent=1 // pred_region
      %685 = vsyncadd [#allocation5], 0
      %s687 = sshll.u32 [#allocation8], 4
      %s688 = int_to_ptr.vmem [resolvable:$true] %s687
      %s689 = sshll.u32 %s5, 4
      %s690 = int_to_ptr.hbm [resolvable:$true] %s689
      %692 = dma.vmem_to_hbm [thread:$0]  %s688, 16, %s690, [#allocation5]
    $region33: #{tpu_custom_call.1} parent=1 // pred_fallthru
      _
    // Predicated region
    $region34: #{tpu_custom_call.1} parent=1 // pred_check
      _
    $region35: #{tpu_custom_call.1} parent=1 // pred_check_branch
      %694 = sbr.rel (0) target = $region37
    $region36: #{tpu_custom_call.1} parent=1 // pred_region
      %696 = dma.done [#allocation5], 16
    $region37: #{tpu_custom_call.1} parent=1 // pred_fallthru
      _
    %697 = vsyncpa [#allocation4], 1
    %698 = vsyncpa [#allocation7], 1
    %699 = vsyncpa [#allocation5], 1

</llo_original>
